<compile_context>
chip_gen: v7x
topology: tpu7x:2x2x1
jax: 0.10.0
libtpu: 0.0.40
codegen_flags: <defaults>
</compile_context>

<pallas_src>
import functools

import jax
import jax.numpy as jnp
from jax.experimental import pallas as pl
from jax.experimental.pallas import tpu as pltpu


_MIB = 2 ** 20
_VMEM_TILE_BUDGET = 20 * _MIB     # per-tile footprint target (fits every chip)


def _choose_row_tile(h, w, tile_bytes, budget=_VMEM_TILE_BUDGET):
    """Largest row tile TH dividing H with (TH*W) % 8 == 0 under the budget."""
    divisors = [d for d in range(1, h + 1)
                if h % d == 0 and ((d * w) % 8 == 0 or d == h)]
    fitting = [d for d in divisors if tile_bytes(d) <= budget]
    return max(fitting) if fitting else min(divisors)


# ----------------------------------------------------------------------------
# Path A: Cin % 128 == 0 (ResNet body layers).
# Manual halo DMA from HBM + in-kernel im2col + one fused MXU matmul.
# ----------------------------------------------------------------------------
def _conv_halo_kernel(x_hbm, w_ref, o_ref, halo, patch, sem, *, kh, kw):
    # x_hbm: (N, H, W, Cin) bf16, raw HBM ref (memory_space=pl.ANY)
    # w_ref: (K, TCO)       bf16 im2col weight tile, K = kh*kw*Cin
    # o_ref: (TH*W, TCO)    bf16 output slab (leading N / H-tile axes squeezed)
    # halo:  (TH+kh-1, W+kw-1, Cin) bf16 VMEM scratch (halo row window)
    # patch: (TH*W, K)      bf16 VMEM scratch (im2col slab, reused across c)
    hh, wp, cin = halo.shape
    th = hh - (kh - 1)
    w = wp - (kw - 1)
    ph, pw = kh // 2, kw // 2
    k = kh * kw * cin

    n = pl.program_id(0)
    h = pl.program_id(1)
    c = pl.program_id(2)
    n_h = pl.num_programs(1)

    @pl.when(c == 0)
    def _():
        # 'same' padding folded into the halo window: zero the border strips
        # that no DMA overwrites.
        if pw > 0:
            halo[:, 0:pw, :] = jnp.zeros((hh, pw, cin), halo.dtype)
            halo[:, pw + w:, :] = jnp.zeros((hh, pw, cin), halo.dtype)
        if ph > 0:
            @pl.when(h == 0)
            def _():
                halo[0:ph, :, :] = jnp.zeros((ph, wp, cin), halo.dtype)

            @pl.when(h == n_h - 1)
            def _():
                halo[hh - ph:, :, :] = jnp.zeros((ph, wp, cin), halo.dtype)

        row0 = h * th
        # Body rows [h*th, h*th+th) are always valid.
        body = pltpu.make_async_copy(
            x_hbm.at[n, pl.ds(row0, th), :, :],
            halo.at[pl.ds(ph, th), pl.ds(pw, w), :],
            sem.at[0])
        body.start()

        if ph > 0:
            # Top / bottom halo rows from the neighbouring tiles; these small
            # copies overlap with the body DMA issued above.
            @pl.when(h > 0)
            def _():
                top = pltpu.make_async_copy(
                    x_hbm.at[n, pl.ds(row0 - ph, ph), :, :],
                    halo.at[pl.ds(0, ph), pl.ds(pw, w), :],
                    sem.at[1])
                top.start()
                top.wait()

            @pl.when(h < n_h - 1)
            def _():
                bot = pltpu.make_async_copy(
                    x_hbm.at[n, pl.ds(row0 + th, ph), :, :],
                    halo.at[pl.ds(ph + th, ph), pl.ds(pw, w), :],
                    sem.at[2])
                bot.start()
                bot.wait()

        body.wait()

        # Build the (TH*W, K) im2col slab once; reused for every Cout tile.
        # Column order (dh, dw, ci) matches the wrapper's weight reshape.
        cols = []
        for dh in range(kh):                      # static unroll
            for dw in range(kw):
                cols.append(halo[dh:dh + th, dw:dw + w, :])
        patch[...] = jnp.concatenate(cols, axis=-1).reshape(th * w, k)

    # One fused MXU matmul per (n, h, c): f32 accumulation, bf16 store.
    o_ref[...] = jnp.dot(patch[...], w_ref[...],
                         preferred_element_type=jnp.float32).astype(o_ref.dtype)


def _conv_same_halo(x, w_im2col, *, kh, kw, tco, row_tile):
    n, h, w, cin = x.shape
    k, cout_pad = w_im2col.shape
    n_co = cout_pad // tco

    def tile_bytes(th):
        return ((th + kh - 1) * (w + kw - 1) * cin * 2      # halo scratch
                + th * w * k * 2                             # im2col scratch
                + 2 * k * tco * 2                            # weight (2 bufs)
                + 2 * th * w * tco * 2                       # bf16 out (2 bufs)
                + th * w * tco * 4)                          # f32 matmul result

    th = row_tile if row_tile is not None else _choose_row_tile(h, w, tile_bytes)
    assert h % th == 0 and ((th * w) % 8 == 0 or th == h)
    n_h = h // th
    est = tile_bytes(th)
    vmem_limit = int(min(max(2 * est, 32 * _MIB), 64 * _MIB))

    kernel = functools.partial(_conv_halo_kernel, kh=kh, kw=kw)
    cost = pl.CostEstimate(
        flops=2 * n * h * w * k * cout_pad,
        transcendentals=0,
        bytes_accessed=2 * (n * h * w * cin + k * cout_pad + n * h * w * cout_pad))

    return pl.pallas_call(
        kernel,
        out_shape=jax.ShapeDtypeStruct((n, h * w, cout_pad), jnp.bfloat16),
        grid_spec=pltpu.PrefetchScalarGridSpec(
            num_scalar_prefetch=0,
            grid=(n, n_h, n_co),
            in_specs=[
                pl.BlockSpec(memory_space=pl.ANY),             # x stays in HBM
                pl.BlockSpec((k, tco), lambda ni, hi, ci: (0, ci)),
            ],
            out_specs=pl.BlockSpec((None, th * w, tco),
                                   lambda ni, hi, ci: (ni, hi, ci)),
            scratch_shapes=[
                pltpu.VMEM((th + kh - 1, w + kw - 1, cin), jnp.bfloat16),
                pltpu.VMEM((th * w, k), jnp.bfloat16),
                pltpu.SemaphoreType.DMA((3,)),
            ]),
        compiler_params=pltpu.CompilerParams(
            dimension_semantics=("parallel", "parallel", "arbitrary"),
            vmem_limit_bytes=vmem_limit),
        cost_estimate=cost,
    )(x, w_im2col)


# ----------------------------------------------------------------------------
# Path B: small Cin (stem-like layers).  Wrapper-side XLA im2col -> plain
# tiled matmul kernel with a lane-dense (TM, K_pad) LHS slab.
# ----------------------------------------------------------------------------
def _conv_matmul_kernel(p_ref, w_ref, o_ref):
    o_ref[...] = jnp.dot(p_ref[...], w_ref[...],
                         preferred_element_type=jnp.float32).astype(o_ref.dtype)


def _conv_same_matmul(x, w_im2col, *, kh, kw, tco, row_tile):
    n, h, w, cin = x.shape
    k, cout_pad = w_im2col.shape
    n_co = cout_pad // tco
    k_pad = pl.cdiv(k, 128) * 128

    ph, pw = kh // 2, kw // 2
    xp = jnp.pad(x, ((0, 0), (ph, ph), (pw, pw), (0, 0)))
    cols = [xp[:, dh:dh + h, dw:dw + w, :]
            for dh in range(kh) for dw in range(kw)]
    patches = jnp.concatenate(cols, axis=-1).reshape(n, h * w, k)
    if k_pad != k:
        patches = jnp.pad(patches, ((0, 0), (0, 0), (0, k_pad - k)))
        w_im2col = jnp.pad(w_im2col, ((0, k_pad - k), (0, 0)))

    def tile_bytes(th):
        return (2 * th * w * k_pad * 2          # lhs tile (2 bufs)
                + 2 * k_pad * tco * 2           # weight tile (2 bufs)
                + 2 * th * w * tco * 2          # bf16 out tile (2 bufs)
                + th * w * tco * 4)             # f32 matmul result

    th = row_tile if row_tile is not None else _choose_row_tile(h, w, tile_bytes)
    assert h % th == 0 and ((th * w) % 8 == 0 or th == h)
    n_m = h // th
    tm = th * w
    est = tile_bytes(th)
    vmem_limit = int(min(max(2 * est, 32 * _MIB), 64 * _MIB))

    cost = pl.CostEstimate(
        flops=2 * n * h * w * k_pad * cout_pad,
        transcendentals=0,
        bytes_accessed=2 * (n * h * w * k_pad + k_pad * cout_pad
                            + n * h * w * cout_pad))

    return pl.pallas_call(
        _conv_matmul_kernel,
        out_shape=jax.ShapeDtypeStruct((n, h * w, cout_pad), jnp.bfloat16),
        grid_spec=pltpu.PrefetchScalarGridSpec(
            num_scalar_prefetch=0,
            grid=(n, n_m, n_co),
            in_specs=[
                pl.BlockSpec((None, tm, k_pad), lambda ni, mi, ci: (ni, mi, 0)),
                pl.BlockSpec((k_pad, tco), lambda ni, mi, ci: (0, ci)),
            ],
            out_specs=pl.BlockSpec((None, tm, tco),
                                   lambda ni, mi, ci: (ni, mi, ci)),
        ),
        compiler_params=pltpu.CompilerParams(
            dimension_semantics=("parallel", "parallel", "arbitrary"),
            vmem_limit_bytes=vmem_limit),
        cost_estimate=cost,
    )(patches, w_im2col)


# ----------------------------------------------------------------------------
# Public conv wrappers.
# ----------------------------------------------------------------------------
def pallas_conv2d_same_nhwc(x_nhwc, weight_oihw, *, cout_tile=None, row_tile=None):
    """Conv2d, stride 1, 'same' padding, no bias.  NHWC in -> bf16 NHWC out."""
    n, h, w, cin = x_nhwc.shape
    cout, cin_w, kh, kw = weight_oihw.shape
    assert cin == cin_w
    # Symmetric padding reproduces PyTorch 'same' only for odd kernels.
    assert kh % 2 == 1 and kw % 2 == 1, "only odd kernel sizes supported"

    if cout_tile is None:
        # 256-wide MXU on v6e/v7x; 128 for small Cout (and v5e's 128-wide MXU).
        cout_tile = 256 if cout >= 256 else 128
    cout_pad = pl.cdiv(cout, cout_tile) * cout_tile

    # im2col weight (K, Cout_pad), row index = (dh*KW + dw)*Cin + ci.
    k = kh * kw * cin
    w_im2col = jnp.transpose(weight_oihw, (2, 3, 1, 0)).reshape(k, cout)
    w_im2col = w_im2col.astype(jnp.bfloat16)
    if cout_pad != cout:
        w_im2col = jnp.pad(w_im2col, ((0, 0), (0, cout_pad - cout)))

    # TODO(synk): bf16 activations/weights (f32 accumulation) deviate from the
    # PyTorch module's f32 math; keep an f32 path if bit parity is required.
    x = x_nhwc.astype(jnp.bfloat16)

    if cin % 128 == 0:
        out_flat = _conv_same_halo(x, w_im2col, kh=kh, kw=kw,
                                   tco=cout_tile, row_tile=row_tile)
    else:
        out_flat = _conv_same_matmul(x, w_im2col, kh=kh, kw=kw,
                                     tco=cout_tile, row_tile=row_tile)

    out = out_flat.reshape(n, h, w, cout_pad)
    return out[..., :cout]                      # bf16, NHWC


def pallas_conv2d_same(x_nchw, weight_oihw, **kwargs):
    # NCHW boundary wrapper for PyTorch parity.  For a full NHWC network, call
    # pallas_conv2d_same_nhwc directly and keep bf16 NHWC end-to-end (saves two
    # activation-sized HBM transpose passes per conv).
    x_nhwc = jnp.transpose(x_nchw, (0, 2, 3, 1))
    out_nhwc = pallas_conv2d_same_nhwc(x_nhwc, weight_oihw, **kwargs)
    return jnp.transpose(out_nhwc, (0, 3, 1, 2)).astype(jnp.float32)


# ----------------------------------------------------------------------------
# The "mlp" that generates the conv weight (parameter setup / glue in JAX).
# ----------------------------------------------------------------------------
def init_mlp_params(key, hidden, kh, kw):
    k1, k2, k3, k4 = jax.random.split(key, 4)
    return dict(
        w1=0.5 * jax.random.normal(k1, (2, hidden), jnp.float32),
        b1=0.1 * jax.random.normal(k2, (hidden,), jnp.float32),
        w2=0.5 * jax.random.normal(k3, (hidden, kh * kw), jnp.float32),
        b2=0.1 * jax.random.normal(k4, (kh * kw,), jnp.float32),
    )


def mlp_apply(params, x_flat, y_flat):
    coords = jnp.stack([x_flat, y_flat], axis=-1)           # (n1*n2, 2)
    hdn = jnp.tanh(coords @ params["w1"] + params["b1"])
    return hdn @ params["w2"] + params["b2"]                # (n1*n2, kh*kw)


def generate_conv_weight(mlp_params, n_out, n_in, kh, kw):
    xs = jnp.linspace(-1.0, 1.0, n_out)
    ys = jnp.linspace(-1.0, 1.0, n_in)
    xv, yv = jnp.meshgrid(xs, ys, indexing="ij")            # torch default 'ij'
    mlp_out = mlp_apply(mlp_params, xv.flatten(), yv.flatten())
    return mlp_out.reshape(n_out, n_in, kh, kw)             # OIHW


def parametrized_conv_forward(mlp_params, x_nchw, *, n_out, n_in, kh, kw):
    # The PyTorch in-place `conv.weight.data = mlp_output` is expressed
    # functionally: the weight is regenerated from the mlp every forward.
    weight = generate_conv_weight(mlp_params, n_out, n_in, kh, kw)
    return pallas_conv2d_same(x_nchw, weight)


# ----------------------------------------------------------------------------
if __name__ == "__main__":
    key = jax.random.PRNGKey(0)
    k_x, k_mlp, k_x2, k_w2 = jax.random.split(key, 4)

    # --- Test 1: ParametrizedConv forward (small Cin -> wrapper-im2col path).
    N, Cin, H, W = 2, 4, 16, 16
    Cout, KH, KW = 8, 3, 3
    HIDDEN = 32

    x = jax.random.normal(k_x, (N, Cin, H, W), jnp.float32)
    mlp_params = init_mlp_params(k_mlp, HIDDEN, KH, KW)

    fwd = jax.jit(functools.partial(parametrized_conv_forward,
                                    n_out=Cout, n_in=Cin, kh=KH, kw=KW))
    out = jax.block_until_ready(fwd(mlp_params, x))

    weight = generate_conv_weight(mlp_params, Cout, Cin, KH, KW)
    x_q = x.astype(jnp.bfloat16).astype(jnp.float32)
    w_q = weight.astype(jnp.bfloat16).astype(jnp.float32)
    ref = jax.lax.conv_general_dilated(
        x_q, w_q, window_strides=(1, 1), padding="SAME",
        dimension_numbers=("NCHW", "OIHW", "NCHW"))
    assert out.shape == (N, Cout, H, W)
    assert jnp.allclose(out, ref, atol=2e-2, rtol=2e-2)

    # --- Test 2: body-layer shape (Cin % 128 == 0 -> manual halo-DMA path),
    # NHWC end-to-end; row_tile=4 forces 2 H-tiles so the halo DMAs and the
    # boundary zero-fills are exercised at runtime.
    N2, H2, W2, Cin2, Cout2 = 1, 8, 8, 128, 384
    x2 = jax.random.normal(k_x2, (N2, H2, W2, Cin2), jnp.float32)
    w2 = jax.random.normal(k_w2, (Cout2, Cin2, KH, KW), jnp.float32)
    w2 = w2 / jnp.sqrt(float(KH * KW * Cin2))

    conv_nhwc = jax.jit(functools.partial(pallas_conv2d_same_nhwc, row_tile=4))
    out2 = jax.block_until_ready(conv_nhwc(x2, w2))

    x2_q = x2.astype(jnp.bfloat16).astype(jnp.float32)
    w2_q = w2.astype(jnp.bfloat16).astype(jnp.float32)
    ref2 = jax.lax.conv_general_dilated(
        x2_q, jnp.transpose(w2_q, (2, 3, 1, 0)), window_strides=(1, 1),
        padding="SAME", dimension_numbers=("NHWC", "HWIO", "NHWC"))
    assert out2.shape == (N2, H2, W2, Cout2)
    assert jnp.allclose(out2.astype(jnp.float32), ref2, atol=3e-2, rtol=3e-2)

    print("KERNEL_OK")
</pallas_src>

<mosaic_0001>
module attributes {stable_mosaic.version = 11 : i64} {
  func.func @_conv_matmul_kernel(%arg0: i32, %arg1: i32, %arg2: i32, %arg3: memref<1x256x128xbf16, #tpu.memory_space<vmem>>, %arg4: memref<128x128xbf16, #tpu.memory_space<vmem>>, %arg5: memref<1x256x128xbf16, #tpu.memory_space<vmem>>) attributes {dimension_semantics = [#tpu.dimension_semantics<parallel>, #tpu.dimension_semantics<parallel>, #tpu.dimension_semantics<arbitrary>], iteration_bounds = array<i64: 2, 1, 1>, scalar_prefetch = 0 : i64, scratch_operands = 0 : i64, tpu.core_type = #tpu.core_type<tc>, window_params = [{transform_indices = @transform_0, window_bounds = array<i64: 1, 256, 128>}, {transform_indices = @transform_1, window_bounds = array<i64: 128, 128>}, {transform_indices = @transform_2, window_bounds = array<i64: 1, 256, 128>}]} {
    %c0 = arith.constant 0 : index
    %c0_0 = arith.constant 0 : index
    %c0_1 = arith.constant 0 : index
    %0 = vector.load %arg3[%c0, %c0_0, %c0_1] : memref<1x256x128xbf16, #tpu.memory_space<vmem>>, vector<1x256x128xbf16>
    %1 = vector.shape_cast %0 : vector<1x256x128xbf16> to vector<256x128xbf16>
    %c0_2 = arith.constant 0 : index
    %c0_3 = arith.constant 0 : index
    %2 = vector.load %arg4[%c0_2, %c0_3] : memref<128x128xbf16, #tpu.memory_space<vmem>>, vector<128x128xbf16>
    %cst = arith.constant dense<0.000000e+00> : vector<256x128xf32>
    %3 = tpu.matmul %1, %2, %cst {dimension_numbers = #tpu.dot_dimension_numbers<[1], [0], [0], [1], [0, 0, 1, 1], [], []>} : vector<256x128xbf16>, vector<128x128xbf16>, vector<256x128xf32> -> vector<256x128xf32>
    %4 = arith.truncf %3 : vector<256x128xf32> to vector<256x128xbf16>
    %c0_4 = arith.constant 0 : index
    %c0_5 = arith.constant 0 : index
    %c0_6 = arith.constant 0 : index
    %5 = vector.load %arg5[%c0_4, %c0_5, %c0_6] : memref<1x256x128xbf16, #tpu.memory_space<vmem>>, vector<1x256x128xbf16>
    %6 = vector.shape_cast %5 : vector<1x256x128xbf16> to vector<256x128xbf16>
    %7 = vector.shape_cast %4 : vector<256x128xbf16> to vector<1x256x128xbf16>
    tpu.vector_store %arg5[%c0_4, %c0_5, %c0_6], %7 {strides = array<i32>} : memref<1x256x128xbf16, #tpu.memory_space<vmem>>, vector<1x256x128xbf16>,
    return
  }
  func.func @transform_0(%arg0: i32, %arg1: i32, %arg2: i32) -> (i32, i32, i32) {
    %c0_i32 = arith.constant 0 : i32
    %c0_i32_0 = arith.constant 0 : i32
    return %arg0, %arg1, %c0_i32 : i32, i32, i32
  }
  func.func @transform_1(%arg0: i32, %arg1: i32, %arg2: i32) -> (i32, i32) {
    %c0_i32 = arith.constant 0 : i32
    %c0_i32_0 = arith.constant 0 : i32
    return %c0_i32, %arg2 : i32, i32
  }
  func.func @transform_2(%arg0: i32, %arg1: i32, %arg2: i32) -> (i32, i32, i32) {
    %c0_i32 = arith.constant 0 : i32
    return %arg0, %arg1, %arg2 : i32, i32, i32
  }
}

</mosaic_0001>

<llo_original>
// kernel: parametrized_conv_forward.1
$region0: #{parametrized_conv_forward.1}
  #allocation0 [shape = 'u32[]', space=smem, size = 0x4, offset = 0x4, fixed_abs, tag = 'smem constant byte address 0x4 - core index']
  #allocation1 [shape = 'u32[144,128]{1,0:T(1,128)}', space=vmem, size = 0x12000, scoped, tag = 'internal scratch']
  %s0 = inlined_call_operand.vmem [shape: bf16[2,256,128], index: 0, kind: input, shape index: {}]
  %s1 = inlined_call_operand.vmem [shape: bf16[128,128], index: 1, kind: input, shape index: {}]
  %s2 = inlined_call_operand.vmem [shape: bf16[2,256,128], index: 2, kind: output, shape index: {}]
  %s3 = sld [smem:[#allocation0]]
  $region41: #{parametrized_conv_forward.1} parent=0
    _
  %s5 = ssub.s32 1, %s3
  %s6 = scalar_select 0, %s5, %s3
  loop: start=0, step=1, limit=4
  $region2: #{parametrized_conv_forward.1} parent=0 // loop_pre_header
    _
  $region3: #{parametrized_conv_forward.1} parent=0 // loop_header
    %s8 = sphi 0, %s12
    %p9 = scmp.ge.s32.totalorder %s8, 4
    %s15 = sphi 0, %s34
    %s16 = sphi 0, %s30
    %s17 = sphi 0, %s26
    %s18 = sphi 0, %s15
    %s19 = sphi 0, %s16
    %s20 = sphi 0, %s17
    %s21 = sphi 0, %s18
    %s22 = sphi 0, %s19
    %s23 = sphi 0, %s20
    %s39 = sphi 0, %s41
    %s42 = sphi 0, %s39
    %s43 = sphi 0, %s42
    %s59 = sphi 0, %s43
    %s65 = sphi 0, %s67
    %s68 = sphi 0, %s65
    %s69 = sphi 0, %s68
    %s85 = sphi 0, %s69
    %s95 = sphi 0, %s97
    %s98 = sphi 0, %s95
    %s99 = sphi 0, %s98
    %s115 = sphi 0, %s99
  $region4: #{parametrized_conv_forward.1} parent=0 // loop_header_branch
    %11 = sbr.rel (%p9) target = $region8
  $region5: #{parametrized_conv_forward.1} parent=0 // loop_body
    %s13 = ssub.s32 %s8, 1
    %s14 = ssub.s32 %s8, 2
    %s24 = sadd.s32 1, %s17
    %p25 = scmp.ge.s32.totalorder %s24, 1
    %s26 = scalar_select %p25, 0, %s24
    %s27 = sadd.s32 1, %s16
    %s28 = scalar_select %p25, %s27, %s16
    %p29 = scmp.ge.s32.totalorder %s28, 1
    %s30 = scalar_select %p29, 0, %s28
    %s31 = sadd.s32 1, %s15
    %s32 = scalar_select %p29, %s31, %s15
    %p33 = scmp.ge.s32.totalorder %s32, 2
    %s34 = scalar_select %p33, 0, %s32
    %s35 = ssub.s32 %s15, %s34
    %s36 = ssub.s32 %s16, %s30
    %s37 = sor.u32 %s35, %s36
    %p38 = scmp.eq.s32.totalorder %s37, 0
    %s40 = sadd.s32 %s39, 1
    %s41 = scalar_select %p38, %s39, %s40
    %p44 = pneg %p38
    %p45 = scmp.eq.s32.totalorder %s8, 1
    %p46 = por %p44, %p45
    %p47 = scmp.ne.s32.totalorder %s39, %s42
    %p48 = scmp.eq.s32.totalorder %s8, 0
    %p49 = por %p47, %p48
    %p50 = scmp.ne.s32.totalorder %s39, %s42
    %p51 = scmp.eq.s32.totalorder %s13, 1
    %p52 = por %p50, %p51
    %p53 = scmp.ne.s32.totalorder %s42, %s43
    %p54 = scmp.eq.s32.totalorder %s13, 0
    %p55 = por %p53, %p54
    %p56 = scmp.ne.s32.totalorder %s42, %s43
    %p57 = scmp.eq.s32.totalorder %s14, 1
    %p58 = por %p56, %p57
    %p60 = scmp.ne.s32.totalorder %s43, %s59
    %p61 = scmp.eq.s32.totalorder %s14, 0
    %p62 = por %p60, %p61
    %s63 = ssub.s32 %s17, %s26
    %p64 = scmp.eq.s32.totalorder %s63, 0
    %s66 = sadd.s32 %s65, 1
    %s67 = scalar_select %p64, %s65, %s66
    %p70 = pneg %p64
    %p71 = scmp.eq.s32.totalorder %s8, 1
    %p72 = por %p70, %p71
    %p73 = scmp.ne.s32.totalorder %s65, %s68
    %p74 = scmp.eq.s32.totalorder %s8, 0
    %p75 = por %p73, %p74
    %p76 = scmp.ne.s32.totalorder %s65, %s68
    %p77 = scmp.eq.s32.totalorder %s13, 1
    %p78 = por %p76, %p77
    %p79 = scmp.ne.s32.totalorder %s68, %s69
    %p80 = scmp.eq.s32.totalorder %s13, 0
    %p81 = por %p79, %p80
    %p82 = scmp.ne.s32.totalorder %s68, %s69
    %p83 = scmp.eq.s32.totalorder %s14, 1
    %p84 = por %p82, %p83
    %p86 = scmp.ne.s32.totalorder %s69, %s85
    %p87 = scmp.eq.s32.totalorder %s14, 0
    %p88 = por %p86, %p87
    %s89 = ssub.s32 %s15, %s34
    %s90 = ssub.s32 %s16, %s30
    %s91 = sor.u32 %s89, %s90
    %s92 = ssub.s32 %s17, %s26
    %s93 = sor.u32 %s91, %s92
    %p94 = scmp.eq.s32.totalorder %s93, 0
    %s96 = sadd.s32 %s95, 1
    %s97 = scalar_select %p94, %s95, %s96
    %p100 = pneg %p94
    %p101 = scmp.eq.s32.totalorder %s8, 1
    %p102 = por %p100, %p101
    %p103 = scmp.ne.s32.totalorder %s95, %s98
    %p104 = scmp.eq.s32.totalorder %s8, 0
    %p105 = por %p103, %p104
    %p106 = scmp.ne.s32.totalorder %s95, %s98
    %p107 = scmp.eq.s32.totalorder %s13, 1
    %p108 = por %p106, %p107
    %p109 = scmp.ne.s32.totalorder %s98, %s99
    %p110 = scmp.eq.s32.totalorder %s13, 0
    %p111 = por %p109, %p110
    %p112 = scmp.ne.s32.totalorder %s98, %s99
    %p113 = scmp.eq.s32.totalorder %s14, 1
    %p114 = por %p112, %p113
    %p116 = scmp.ne.s32.totalorder %s99, %s115
    %p117 = scmp.eq.s32.totalorder %s14, 0
    %p118 = por %p116, %p117
    %p119 = scmp.le.s32.totalorder 1, %s8
    %p120 = scmp.lt.s32.totalorder %s8, 3
    %p121 = pnand %p119, %p120
    %p122 = pneg %p121
    // Predicated region
    $region9: #{parametrized_conv_forward.1} parent=5 // pred_check
      _
    $region10: #{parametrized_conv_forward.1} parent=5 // pred_check_branch
      %124 = sbr.rel (%p121) target = $region12
    $region11: #{parametrized_conv_forward.1} parent=5 // pred_region
      %s125 = ssub.s32 %s8, 1
      // Predicated region
      $region13: #{parametrized_conv_forward.1} parent=11 // pred_check
        %p126 = pneg %p81
      $region14: #{parametrized_conv_forward.1} parent=11 // pred_check_branch
        %128 = sbr.rel (%p126) target = $region16
      $region15: #{parametrized_conv_forward.1} parent=11 // pred_region
        %p129 = scmp.lt.s32.totalorder %s20, 0
        %s130 = scalar_select %p129, %s20, 0
        %s131 = smul.addr %s130, 4
        %s132 = scalar_lea.vmem %s1, %s131
      $region16: #{parametrized_conv_forward.1} parent=11 // pred_fallthru
        _
    $region12: #{parametrized_conv_forward.1} parent=5 // pred_fallthru
      _
    %p133 = scmp.lt.s32.totalorder %s8, 2
    // Predicated region
    $region17: #{parametrized_conv_forward.1} parent=5 // pred_check
      %p134 = pneg %p133
    $region18: #{parametrized_conv_forward.1} parent=5 // pred_check_branch
      %136 = sbr.rel (%p134) target = $region20
    $region19: #{parametrized_conv_forward.1} parent=5 // pred_region
      // Predicated region
      $region21: #{parametrized_conv_forward.1} parent=19 // pred_check
        %p137 = pneg %p49
      $region22: #{parametrized_conv_forward.1} parent=19 // pred_check_branch
        %139 = sbr.rel (%p137) target = $region24
      $region23: #{parametrized_conv_forward.1} parent=19 // pred_region
        %s140 = smul.u32 32, %s16
        %p141 = scmp.lt.s32.totalorder %s15, 1
        %s142 = scalar_select %p141, %s15, 1
        %p143 = scmp.lt.s32.totalorder %s140, 31
        %s144 = scalar_select %p143, %s140, 31
        %s145 = smul.addr %s142, 32
        %s146 = sadd.s32 %s144, %s145
        %s147 = smul.addr %s146, 4
        %s148 = scalar_lea.vmem %s0, %s147
        %s149 = smul.u32 32, %s16
      $region24: #{parametrized_conv_forward.1} parent=19 // pred_fallthru
        _
    $region20: #{parametrized_conv_forward.1} parent=5 // pred_fallthru
      _
    %p150 = scmp.le.s32.totalorder 1, %s8
    %p151 = scmp.lt.s32.totalorder %s8, 3
    %p152 = pnand %p150, %p151
    %p153 = pneg %p152
    // Predicated region
    $region25: #{parametrized_conv_forward.1} parent=5 // pred_check
      _
    $region26: #{parametrized_conv_forward.1} parent=5 // pred_check_branch
      %155 = sbr.rel (%p152) target = $region28
    $region27: #{parametrized_conv_forward.1} parent=5 // pred_region
      %s156 = ssub.s32 %s8, 1
      %s157 = smul.u32 32, %s19
      %p158 = scmp.lt.s32.totalorder %s18, 1
      %s159 = scalar_select %p158, %s18, 1
      %p160 = scmp.lt.s32.totalorder %s157, 31
      %s161 = scalar_select %p160, %s157, 31
      %s162 = smul.addr %s159, 32
      %s163 = sadd.s32 %s161, %s162
      %s164 = smul.addr %s163, 4
      %s165 = scalar_lea.vmem %s0, %s164
      %p166 = pneg %p55
      %p167 = pneg %p52
      %p168 = scmp.lt.s32.totalorder %s20, 0
      %s169 = scalar_select %p168, %s20, 0
      %s170 = smul.addr %s169, 4
      %s171 = scalar_lea.vmem %s1, %s170
      %p172 = pneg %p81
      %p173 = pneg %p78
      %p174 = pneg %p111
      %p175 = pneg %p108
      %s176 = smul.u32 32, %s19
      %p177 = scmp.lt.s32.totalorder %s18, 1
      %s178 = scalar_select %p177, %s18, 1
      %p179 = scmp.lt.s32.totalorder %s176, 31
      %s180 = scalar_select %p179, %s176, 31
      %p181 = scmp.lt.s32.totalorder %s20, 0
      %s182 = scalar_select %p181, %s20, 0
      %s183 = sadd.s32 %s182, %s180
      %s184 = smul.addr %s178, 32
      %s185 = sadd.s32 %s183, %s184
      %s186 = smul.addr %s185, 4
      %s187 = scalar_lea.vmem %s2, %s186
      %s188 = smul.u32 32, %s19
      %p189 = scmp.lt.s32.totalorder %s18, 1
      %s190 = scalar_select %p189, %s18, 1
      %p191 = scmp.lt.s32.totalorder %s188, 31
      %s192 = scalar_select %p191, %s188, 31
      %s193 = smul.addr %s190, 32
      %s194 = sadd.s32 %s192, %s193
      %s195 = smul.addr %s194, 4
      %s196 = scalar_lea.vmem %s0, %s195
      %s197 = smul.u32 32, %s19
      %p198 = scmp.lt.s32.totalorder %s20, 0
      %s199 = scalar_select %p198, %s20, 0
      %s200 = smul.addr %s199, 4
      %s201 = scalar_lea.vmem %s1, %s200
      %s202 = smul.u32 32, %s19
      %p203 = scmp.lt.s32.totalorder %s18, 1
      %s204 = scalar_select %p203, %s18, 1
      %p205 = scmp.lt.s32.totalorder %s202, 31
      %s206 = scalar_select %p205, %s202, 31
      %p207 = scmp.lt.s32.totalorder %s20, 0
      %s208 = scalar_select %p207, %s20, 0
      %s209 = sadd.s32 %s208, %s206
      %s210 = smul.addr %s204, 32
      %s211 = sadd.s32 %s209, %s210
      %s212 = smul.addr %s211, 4
      %s213 = scalar_lea.vmem %s2, %s212
      %s214 = smul.u32 32, %s19
      %v216 = vld [vmem:[%s196] sm:$0xf]
      %v217 = vld [vmem:[%s196 + $0x4] sm:$0xf]
      %v218 = vld [vmem:[%s196 + $0x8] sm:$0xf]
      %v219 = vld [vmem:[%s196 + $0xc] sm:$0xf]
      %v220 = vld [vmem:[%s196 + $0x10] sm:$0xf]
      %v221 = vld [vmem:[%s196 + $0x14] sm:$0xf]
      %v222 = vld [vmem:[%s196 + $0x18] sm:$0xf]
      %v223 = vld [vmem:[%s196 + $0x1c] sm:$0xf]
      %v224 = vld [vmem:[%s196 + $0x20] sm:$0xf]
      %v225 = vld [vmem:[%s196 + $0x24] sm:$0xf]
      %v226 = vld [vmem:[%s196 + $0x28] sm:$0xf]
      %v227 = vld [vmem:[%s196 + $0x2c] sm:$0xf]
      %v228 = vld [vmem:[%s196 + $0x30] sm:$0xf]
      %v229 = vld [vmem:[%s196 + $0x34] sm:$0xf]
      %v230 = vld [vmem:[%s196 + $0x38] sm:$0xf]
      %v231 = vld [vmem:[%s196 + $0x3c] sm:$0xf]
      %v232 = vld [vmem:[%s196 + $0x40] sm:$0xf]
      %v233 = vld [vmem:[%s196 + $0x44] sm:$0xf]
      %v234 = vld [vmem:[%s196 + $0x48] sm:$0xf]
      %v235 = vld [vmem:[%s196 + $0x4c] sm:$0xf]
      %v236 = vld [vmem:[%s196 + $0x50] sm:$0xf]
      %v237 = vld [vmem:[%s196 + $0x54] sm:$0xf]
      %v238 = vld [vmem:[%s196 + $0x58] sm:$0xf]
      %v239 = vld [vmem:[%s196 + $0x5c] sm:$0xf]
      %v240 = vld [vmem:[%s196 + $0x60] sm:$0xf]
      %v241 = vld [vmem:[%s196 + $0x64] sm:$0xf]
      %v242 = vld [vmem:[%s196 + $0x68] sm:$0xf]
      %v243 = vld [vmem:[%s196 + $0x6c] sm:$0xf]
      %v244 = vld [vmem:[%s196 + $0x70] sm:$0xf]
      %v245 = vld [vmem:[%s196 + $0x74] sm:$0xf]
      %v246 = vld [vmem:[%s196 + $0x78] sm:$0xf]
      %v247 = vld [vmem:[%s196 + $0x7c] sm:$0xf]
      %v248 = vld [vmem:[%s201] sm:$0xf]
      %v249 = vld [vmem:[%s201 + $0x4] sm:$0xf]
      %v250 = vld [vmem:[%s201 + $0x8] sm:$0xf]
      %v251 = vld [vmem:[%s201 + $0xc] sm:$0xf]
      %v252 = vld [vmem:[%s201 + $0x10] sm:$0xf]
      %v253 = vld [vmem:[%s201 + $0x14] sm:$0xf]
      %v254 = vld [vmem:[%s201 + $0x18] sm:$0xf]
      %v255 = vld [vmem:[%s201 + $0x1c] sm:$0xf]
      %v256 = vld [vmem:[%s201 + $0x20] sm:$0xf]
      %v257 = vld [vmem:[%s201 + $0x24] sm:$0xf]
      %v258 = vld [vmem:[%s201 + $0x28] sm:$0xf]
      %v259 = vld [vmem:[%s201 + $0x2c] sm:$0xf]
      %v260 = vld [vmem:[%s201 + $0x30] sm:$0xf]
      %v261 = vld [vmem:[%s201 + $0x34] sm:$0xf]
      %v262 = vld [vmem:[%s201 + $0x38] sm:$0xf]
      %v263 = vld [vmem:[%s201 + $0x3c] sm:$0xf]
      %v296 = vunpack.c.l.b16 %v216
      %v297 = vunpack.c.l.b16 %v217
      %v298 = vunpack.c.l.b16 %v218
      %v299 = vunpack.c.l.b16 %v219
      %v300 = vunpack.c.l.b16 %v220
      %v301 = vunpack.c.l.b16 %v221
      %v302 = vunpack.c.l.b16 %v222
      %v303 = vunpack.c.l.b16 %v223
      %v304 = vunpack.c.l.b16 %v224
      %v305 = vunpack.c.l.b16 %v225
      %v306 = vunpack.c.l.b16 %v226
      %v307 = vunpack.c.l.b16 %v227
      %v308 = vunpack.c.l.b16 %v228
      %v309 = vunpack.c.l.b16 %v229
      %v310 = vunpack.c.l.b16 %v230
      %v311 = vunpack.c.l.b16 %v231
      %v312 = vunpack.c.l.b16 %v232
      %v313 = vunpack.c.l.b16 %v233
      %v314 = vunpack.c.l.b16 %v234
      %v315 = vunpack.c.l.b16 %v235
      %v316 = vunpack.c.l.b16 %v236
      %v317 = vunpack.c.l.b16 %v237
      %v318 = vunpack.c.l.b16 %v238
      %v319 = vunpack.c.l.b16 %v239
      %v320 = vunpack.c.l.b16 %v240
      %v321 = vunpack.c.l.b16 %v241
      %v322 = vunpack.c.l.b16 %v242
      %v323 = vunpack.c.l.b16 %v243
      %v324 = vunpack.c.l.b16 %v244
      %v325 = vunpack.c.l.b16 %v245
      %v326 = vunpack.c.l.b16 %v246
      %v327 = vunpack.c.l.b16 %v247
      %v328 = vpack.c.b16 %v297, %v296
      %v329 = vpack.c.b16 %v299, %v298
      %v330 = vpack.c.b16 %v301, %v300
      %v331 = vpack.c.b16 %v303, %v302
      %v332 = vpack.c.b16 %v305, %v304
      %v333 = vpack.c.b16 %v307, %v306
      %v334 = vpack.c.b16 %v309, %v308
      %v335 = vpack.c.b16 %v311, %v310
      %v336 = vpack.c.b16 %v313, %v312
      %v337 = vpack.c.b16 %v315, %v314
      %v338 = vpack.c.b16 %v317, %v316
      %v339 = vpack.c.b16 %v319, %v318
      %v340 = vpack.c.b16 %v321, %v320
      %v341 = vpack.c.b16 %v323, %v322
      %v342 = vpack.c.b16 %v325, %v324
      %v343 = vpack.c.b16 %v327, %v326
      %v376 = vunpack.c.l.b16 %v248
      %v377 = vunpack.c.l.b16 %v249
      %v378 = vunpack.c.l.b16 %v250
      %v379 = vunpack.c.l.b16 %v251
      %v380 = vunpack.c.l.b16 %v252
      %v381 = vunpack.c.l.b16 %v253
      %v382 = vunpack.c.l.b16 %v254
      %v383 = vunpack.c.l.b16 %v255
      %v384 = vunpack.c.l.b16 %v256
      %v385 = vunpack.c.l.b16 %v257
      %v386 = vunpack.c.l.b16 %v258
      %v387 = vunpack.c.l.b16 %v259
      %v388 = vunpack.c.l.b16 %v260
      %v389 = vunpack.c.l.b16 %v261
      %v390 = vunpack.c.l.b16 %v262
      %v391 = vunpack.c.l.b16 %v263
      %v392 = vpack.c.b16 %v377, %v376
      %v393 = vpack.c.b16 %v379, %v378
      %v394 = vpack.c.b16 %v381, %v380
      %v395 = vpack.c.b16 %v383, %v382
      %v396 = vpack.c.b16 %v385, %v384
      %v397 = vpack.c.b16 %v387, %v386
      %v398 = vpack.c.b16 %v389, %v388
      %v399 = vpack.c.b16 %v391, %v390
      %408 = vmatprep.subr.bf16.mxu0 0
      %409 = vmatpush1.bf16.msra.mxu0 %v392
      %410 = vmatprep.subr.bf16.mxu0 0
      %411 = vmatpush1.bf16.msra.mxu0 %v393
      %412 = vmatprep.subr.bf16.mxu0 0
      %413 = vmatpush1.bf16.msra.mxu0 %v394
      %414 = vmatprep.subr.bf16.mxu0 0
      %415 = vmatpush1.bf16.msra.mxu0 %v395
      %416 = vmatprep.subr.bf16.mxu0 0
      %417 = vmatpush1.bf16.msra.mxu0 %v396
      %418 = vmatprep.subr.bf16.mxu0 0
      %419 = vmatpush1.bf16.msra.mxu0 %v397
      %420 = vmatprep.subr.bf16.mxu0 0
      %421 = vmatpush1.bf16.msra.mxu0 %v398
      %422 = vmatprep.subr.bf16.mxu0 0
      %423 = vmatpush1.bf16.msra.mxu0 %v399
      %424 = vmatprep.subr.bf16.mxu0 0
      %425 = vmatpush1.bf16.msra.mxu0 0
      %426 = vmatprep.subr.bf16.mxu0 0
      %427 = vmatpush1.bf16.msra.mxu0 0
      %428 = vmatprep.subr.bf16.mxu0 0
      %429 = vmatpush1.bf16.msra.mxu0 0
      %430 = vmatprep.subr.bf16.mxu0 0
      %431 = vmatpush1.bf16.msra.mxu0 0
      %432 = vmatprep.subr.bf16.mxu0 0
      %433 = vmatpush1.bf16.msra.mxu0 0
      %434 = vmatprep.subr.bf16.mxu0 0
      %435 = vmatpush1.bf16.msra.mxu0 0
      %436 = vmatprep.subr.bf16.mxu0 0
      %437 = vmatpush1.bf16.msra.mxu0 0
      %438 = vmatprep.subr.bf16.mxu0 0
      %439 = vmatpush1.bf16.msra.mxu0 0
      %440 = vmatprep.mubr.bf16.mxu0 0
      %441 = vmatmul.mubr.bf16.gmra.mrb[0].mxu0 %v328
      %v442 = vpop.f32.mrb[0].mxu0
      %v443 = vadd.f32 0.0, %v442
      %v444 = vpop.f32.mrb[0].mxu0
      %v445 = vpop.f32.mrb[0].mxu0
      %v446 = vadd.f32 0.0, %v445
      %v447 = vpop.f32.mrb[0].mxu0
      %448 = vmatprep.mubr.bf16.mxu0 0
      %449 = vmatmul.mubr.bf16.gmra.mrb[0].mxu0 %v329
      %v450 = vpop.f32.mrb[0].mxu0
      %v451 = vadd.f32 0.0, %v450
      %v452 = vpop.f32.mrb[0].mxu0
      %v453 = vpop.f32.mrb[0].mxu0
      %v454 = vadd.f32 0.0, %v453
      %v455 = vpop.f32.mrb[0].mxu0
      %456 = vmatprep.mubr.bf16.mxu0 0
      %457 = vmatmul.mubr.bf16.gmra.mrb[0].mxu0 %v330
      %v458 = vpop.f32.mrb[0].mxu0
      %v459 = vadd.f32 0.0, %v458
      %v460 = vpop.f32.mrb[0].mxu0
      %v461 = vpop.f32.mrb[0].mxu0
      %v462 = vadd.f32 0.0, %v461
      %v463 = vpop.f32.mrb[0].mxu0
      %464 = vmatprep.mubr.bf16.mxu0 0
      %465 = vmatmul.mubr.bf16.gmra.mrb[0].mxu0 %v331
      %v466 = vpop.f32.mrb[0].mxu0
      %v467 = vadd.f32 0.0, %v466
      %v468 = vpop.f32.mrb[0].mxu0
      %v469 = vpop.f32.mrb[0].mxu0
      %v470 = vadd.f32 0.0, %v469
      %v471 = vpop.f32.mrb[0].mxu0
      %472 = vmatprep.mubr.bf16.mxu0 0
      %473 = vmatmul.mubr.bf16.gmra.mrb[0].mxu0 %v332
      %v474 = vpop.f32.mrb[0].mxu0
      %v475 = vadd.f32 0.0, %v474
      %v476 = vpop.f32.mrb[0].mxu0
      %v477 = vpop.f32.mrb[0].mxu0
      %v478 = vadd.f32 0.0, %v477
      %v479 = vpop.f32.mrb[0].mxu0
      %480 = vmatprep.mubr.bf16.mxu0 0
      %481 = vmatmul.mubr.bf16.gmra.mrb[0].mxu0 %v333
      %v482 = vpop.f32.mrb[0].mxu0
      %v483 = vadd.f32 0.0, %v482
      %v484 = vpop.f32.mrb[0].mxu0
      %v485 = vpop.f32.mrb[0].mxu0
      %v486 = vadd.f32 0.0, %v485
      %v487 = vpop.f32.mrb[0].mxu0
      %488 = vmatprep.mubr.bf16.mxu0 0
      %489 = vmatmul.mubr.bf16.gmra.mrb[0].mxu0 %v334
      %v490 = vpop.f32.mrb[0].mxu0
      %v491 = vadd.f32 0.0, %v490
      %v492 = vpop.f32.mrb[0].mxu0
      %v493 = vpop.f32.mrb[0].mxu0
      %v494 = vadd.f32 0.0, %v493
      %v495 = vpop.f32.mrb[0].mxu0
      %496 = vmatprep.mubr.bf16.mxu0 0
      %497 = vmatmul.mubr.bf16.gmra.mrb[0].mxu0 %v335
      %v498 = vpop.f32.mrb[0].mxu0
      %v499 = vadd.f32 0.0, %v498
      %v500 = vpop.f32.mrb[0].mxu0
      %v501 = vpop.f32.mrb[0].mxu0
      %v502 = vadd.f32 0.0, %v501
      %v503 = vpop.f32.mrb[0].mxu0
      %504 = vmatprep.mubr.bf16.mxu0 0
      %505 = vmatmul.mubr.bf16.gmra.mrb[0].mxu0 %v336
      %v506 = vpop.f32.mrb[0].mxu0
      %v507 = vadd.f32 0.0, %v506
      %v508 = vpop.f32.mrb[0].mxu0
      %v509 = vpop.f32.mrb[0].mxu0
      %v510 = vadd.f32 0.0, %v509
      %v511 = vpop.f32.mrb[0].mxu0
      %512 = vmatprep.mubr.bf16.mxu0 0
      %513 = vmatmul.mubr.bf16.gmra.mrb[0].mxu0 %v337
      %v514 = vpop.f32.mrb[0].mxu0
      %v515 = vadd.f32 0.0, %v514
      %v516 = vpop.f32.mrb[0].mxu0
      %v517 = vpop.f32.mrb[0].mxu0
      %v518 = vadd.f32 0.0, %v517
      %v519 = vpop.f32.mrb[0].mxu0
      %520 = vmatprep.mubr.bf16.mxu0 0
      %521 = vmatmul.mubr.bf16.gmra.mrb[0].mxu0 %v338
      %v522 = vpop.f32.mrb[0].mxu0
      %v523 = vadd.f32 0.0, %v522
      %v524 = vpop.f32.mrb[0].mxu0
      %v525 = vpop.f32.mrb[0].mxu0
      %v526 = vadd.f32 0.0, %v525
      %v527 = vpop.f32.mrb[0].mxu0
      %528 = vmatprep.mubr.bf16.mxu0 0
      %529 = vmatmul.mubr.bf16.gmra.mrb[0].mxu0 %v339
      %v530 = vpop.f32.mrb[0].mxu0
      %v531 = vadd.f32 0.0, %v530
      %v532 = vpop.f32.mrb[0].mxu0
      %v533 = vpop.f32.mrb[0].mxu0
      %v534 = vadd.f32 0.0, %v533
      %v535 = vpop.f32.mrb[0].mxu0
      %536 = vmatprep.mubr.bf16.mxu0 0
      %537 = vmatmul.mubr.bf16.gmra.mrb[0].mxu0 %v340
      %v538 = vpop.f32.mrb[0].mxu0
      %v539 = vadd.f32 0.0, %v538
      %v540 = vpop.f32.mrb[0].mxu0
      %v541 = vpop.f32.mrb[0].mxu0
      %v542 = vadd.f32 0.0, %v541
      %v543 = vpop.f32.mrb[0].mxu0
      %544 = vmatprep.mubr.bf16.mxu0 0
      %545 = vmatmul.mubr.bf16.gmra.mrb[0].mxu0 %v341
      %v546 = vpop.f32.mrb[0].mxu0
      %v547 = vadd.f32 0.0, %v546
      %v548 = vpop.f32.mrb[0].mxu0
      %v549 = vpop.f32.mrb[0].mxu0
      %v550 = vadd.f32 0.0, %v549
      %v551 = vpop.f32.mrb[0].mxu0
      %552 = vmatprep.mubr.bf16.mxu0 0
      %553 = vmatmul.mubr.bf16.gmra.mrb[0].mxu0 %v342
      %v554 = vpop.f32.mrb[0].mxu0
      %v555 = vadd.f32 0.0, %v554
      %v556 = vpop.f32.mrb[0].mxu0
      %v557 = vpop.f32.mrb[0].mxu0
      %v558 = vadd.f32 0.0, %v557
      %v559 = vpop.f32.mrb[0].mxu0
      %560 = vmatprep.mubr.bf16.mxu0 0
      %561 = vmatmul.mubr.bf16.gmra.mrb[0].mxu0 %v343
      %v562 = vpop.f32.mrb[0].mxu0
      %v563 = vadd.f32 0.0, %v562
      %v564 = vpop.f32.mrb[0].mxu0
      %v565 = vpop.f32.mrb[0].mxu0
      %v566 = vadd.f32 0.0, %v565
      %v567 = vpop.f32.mrb[0].mxu0
      %568 = vdwg.mxu0
      %v569 = vpack.c.bf16 %v446, %v443
      %v570 = vpack.c.bf16 %v454, %v451
      %v571 = vpack.c.bf16 %v462, %v459
      %v572 = vpack.c.bf16 %v470, %v467
      %v573 = vpack.c.bf16 %v478, %v475
      %v574 = vpack.c.bf16 %v486, %v483
      %v575 = vpack.c.bf16 %v494, %v491
      %v576 = vpack.c.bf16 %v502, %v499
      %v577 = vpack.c.bf16 %v510, %v507
      %v578 = vpack.c.bf16 %v518, %v515
      %v579 = vpack.c.bf16 %v526, %v523
      %v580 = vpack.c.bf16 %v534, %v531
      %v581 = vpack.c.bf16 %v542, %v539
      %v582 = vpack.c.bf16 %v550, %v547
      %v583 = vpack.c.bf16 %v558, %v555
      %v584 = vpack.c.bf16 %v566, %v563
      %v601 = vunpack.c.l.b16 %v569
      %v602 = vunpack.c.h.b16 %v569
      %v603 = vunpack.c.l.b16 %v570
      %v604 = vunpack.c.h.b16 %v570
      %v605 = vunpack.c.l.b16 %v571
      %v606 = vunpack.c.h.b16 %v571
      %v607 = vunpack.c.l.b16 %v572
      %v608 = vunpack.c.h.b16 %v572
      %v609 = vunpack.c.l.b16 %v573
      %v610 = vunpack.c.h.b16 %v573
      %v611 = vunpack.c.l.b16 %v574
      %v612 = vunpack.c.h.b16 %v574
      %v613 = vunpack.c.l.b16 %v575
      %v614 = vunpack.c.h.b16 %v575
      %v615 = vunpack.c.l.b16 %v576
      %v616 = vunpack.c.h.b16 %v576
      %v617 = vunpack.c.l.b16 %v577
      %v618 = vunpack.c.h.b16 %v577
      %v619 = vunpack.c.l.b16 %v578
      %v620 = vunpack.c.h.b16 %v578
      %v621 = vunpack.c.l.b16 %v579
      %v622 = vunpack.c.h.b16 %v579
      %v623 = vunpack.c.l.b16 %v580
      %v624 = vunpack.c.h.b16 %v580
      %v625 = vunpack.c.l.b16 %v581
      %v626 = vunpack.c.h.b16 %v581
      %v627 = vunpack.c.l.b16 %v582
      %v628 = vunpack.c.h.b16 %v582
      %v629 = vunpack.c.l.b16 %v583
      %v630 = vunpack.c.h.b16 %v583
      %v631 = vunpack.c.l.b16 %v584
      %v632 = vunpack.c.h.b16 %v584
      %v633 = vpack.c.b16 %v601, %v601
      %v634 = vpack.c.b16 %v602, %v602
      %v635 = vpack.c.b16 %v603, %v603
      %v636 = vpack.c.b16 %v604, %v604
      %v637 = vpack.c.b16 %v605, %v605
      %v638 = vpack.c.b16 %v606, %v606
      %v639 = vpack.c.b16 %v607, %v607
      %v640 = vpack.c.b16 %v608, %v608
      %v641 = vpack.c.b16 %v609, %v609
      %v642 = vpack.c.b16 %v610, %v610
      %v643 = vpack.c.b16 %v611, %v611
      %v644 = vpack.c.b16 %v612, %v612
      %v645 = vpack.c.b16 %v613, %v613
      %v646 = vpack.c.b16 %v614, %v614
      %v647 = vpack.c.b16 %v615, %v615
      %v648 = vpack.c.b16 %v616, %v616
      %v649 = vpack.c.b16 %v617, %v617
      %v650 = vpack.c.b16 %v618, %v618
      %v651 = vpack.c.b16 %v619, %v619
      %v652 = vpack.c.b16 %v620, %v620
      %v653 = vpack.c.b16 %v621, %v621
      %v654 = vpack.c.b16 %v622, %v622
      %v655 = vpack.c.b16 %v623, %v623
      %v656 = vpack.c.b16 %v624, %v624
      %v657 = vpack.c.b16 %v625, %v625
      %v658 = vpack.c.b16 %v626, %v626
      %v659 = vpack.c.b16 %v627, %v627
      %v660 = vpack.c.b16 %v628, %v628
      %v661 = vpack.c.b16 %v629, %v629
      %v662 = vpack.c.b16 %v630, %v630
      %v663 = vpack.c.b16 %v631, %v631
      %v664 = vpack.c.b16 %v632, %v632
      %697 = vst [vmem:[%s213] sm:$0xf] %v633
      %698 = vst [vmem:[%s213 + $0x4] sm:$0xf] %v634
      %699 = vst [vmem:[%s213 + $0x8] sm:$0xf] %v635
      %700 = vst [vmem:[%s213 + $0xc] sm:$0xf] %v636
      %701 = vst [vmem:[%s213 + $0x10] sm:$0xf] %v637
      %702 = vst [vmem:[%s213 + $0x14] sm:$0xf] %v638
      %703 = vst [vmem:[%s213 + $0x18] sm:$0xf] %v639
      %704 = vst [vmem:[%s213 + $0x1c] sm:$0xf] %v640
      %705 = vst [vmem:[%s213 + $0x20] sm:$0xf] %v641
      %706 = vst [vmem:[%s213 + $0x24] sm:$0xf] %v642
      %707 = vst [vmem:[%s213 + $0x28] sm:$0xf] %v643
      %708 = vst [vmem:[%s213 + $0x2c] sm:$0xf] %v644
      %709 = vst [vmem:[%s213 + $0x30] sm:$0xf] %v645
      %710 = vst [vmem:[%s213 + $0x34] sm:$0xf] %v646
      %711 = vst [vmem:[%s213 + $0x38] sm:$0xf] %v647
      %712 = vst [vmem:[%s213 + $0x3c] sm:$0xf] %v648
      %713 = vst [vmem:[%s213 + $0x40] sm:$0xf] %v649
      %714 = vst [vmem:[%s213 + $0x44] sm:$0xf] %v650
      %715 = vst [vmem:[%s213 + $0x48] sm:$0xf] %v651
      %716 = vst [vmem:[%s213 + $0x4c] sm:$0xf] %v652
      %717 = vst [vmem:[%s213 + $0x50] sm:$0xf] %v653
      %718 = vst [vmem:[%s213 + $0x54] sm:$0xf] %v654
      %719 = vst [vmem:[%s213 + $0x58] sm:$0xf] %v655
      %720 = vst [vmem:[%s213 + $0x5c] sm:$0xf] %v656
      %721 = vst [vmem:[%s213 + $0x60] sm:$0xf] %v657
      %722 = vst [vmem:[%s213 + $0x64] sm:$0xf] %v658
      %723 = vst [vmem:[%s213 + $0x68] sm:$0xf] %v659
      %724 = vst [vmem:[%s213 + $0x6c] sm:$0xf] %v660
      %725 = vst [vmem:[%s213 + $0x70] sm:$0xf] %v661
      %726 = vst [vmem:[%s213 + $0x74] sm:$0xf] %v662
      %727 = vst [vmem:[%s213 + $0x78] sm:$0xf] %v663
      %728 = vst [vmem:[%s213 + $0x7c] sm:$0xf] %v664
      %s729 = smul.u32 32, %s19
      %p730 = scmp.lt.s32.totalorder %s18, 1
      %s731 = scalar_select %p730, %s18, 1
      %p732 = scmp.lt.s32.totalorder %s729, 31
      %s733 = scalar_select %p732, %s729, 31
      %p734 = scmp.lt.s32.totalorder %s20, 0
      %s735 = scalar_select %p734, %s20, 0
      %s736 = sadd.s32 %s735, %s733
      %s737 = smul.addr %s731, 32
      %s738 = sadd.s32 %s736, %s737
      %s739 = smul.addr %s738, 4
      %s740 = scalar_lea.vmem %s2, %s739
      // Predicated region
      $region29: #{parametrized_conv_forward.1} parent=27 // pred_check
        %p741 = pneg %p108
      $region30: #{parametrized_conv_forward.1} parent=27 // pred_check_branch
        %743 = sbr.rel (%p741) target = $region32
      $region31: #{parametrized_conv_forward.1} parent=27 // pred_region
        %s744 = smul.u32 32, %s19
      $region32: #{parametrized_conv_forward.1} parent=27 // pred_fallthru
        _
    $region28: #{parametrized_conv_forward.1} parent=5 // pred_fallthru
      _
    %p745 = scmp.le.s32.totalorder 2, %s8
    // Predicated region
    $region33: #{parametrized_conv_forward.1} parent=5 // pred_check
      %p746 = pneg %p745
    $region34: #{parametrized_conv_forward.1} parent=5 // pred_check_branch
      %748 = sbr.rel (%p746) target = $region36
    $region35: #{parametrized_conv_forward.1} parent=5 // pred_region
      %s749 = ssub.s32 %s8, 2
      // Predicated region
      $region37: #{parametrized_conv_forward.1} parent=35 // pred_check
        %p750 = pneg %p114
      $region38: #{parametrized_conv_forward.1} parent=35 // pred_check_branch
        %752 = sbr.rel (%p750) target = $region40
      $region39: #{parametrized_conv_forward.1} parent=35 // pred_region
        %s753 = smul.u32 32, %s22
        %p754 = scmp.lt.s32.totalorder %s21, 1
        %s755 = scalar_select %p754, %s21, 1
        %p756 = scmp.lt.s32.totalorder %s753, 31
        %s757 = scalar_select %p756, %s753, 31
        %p758 = scmp.lt.s32.totalorder %s23, 0
        %s759 = scalar_select %p758, %s23, 0
        %s760 = sadd.s32 %s759, %s757
        %s761 = smul.addr %s755, 32
        %s762 = sadd.s32 %s760, %s761
        %s763 = smul.addr %s762, 4
        %s764 = scalar_lea.vmem %s2, %s763
      $region40: #{parametrized_conv_forward.1} parent=35 // pred_fallthru
        _
    $region36: #{parametrized_conv_forward.1} parent=5 // pred_fallthru
      _
  $region6: #{parametrized_conv_forward.1} parent=0 // loop_footer
    %s12 = sadd.s32 1, %s8
  $region7: #{parametrized_conv_forward.1} parent=0 // loop_footer_branch
    %7 = sbr.rel target = $region3
  $region8: #{parametrized_conv_forward.1} parent=0 // loop_exit
    _

</llo_original>
